<compile_context>
chip_gen: v7x
topology: tpu7x:2x2x1
jax: 0.10.0
libtpu: 0.0.40
codegen_flags: <defaults>
</compile_context>

<pallas_src>
import jax
import jax.numpy as jnp
from jax.experimental import pallas as pl
from jax.experimental.pallas import tpu as pltpu


def residual_mlp_kernel(x_ref, w1_ref, b1_ref, w2_ref, b2_ref, o_ref):
    """out = x + relu(x @ W1 + b1) @ W2 + b2 for one batch tile.

    x_ref / o_ref : [BT, H] bf16   (batch tile, advances with the grid)
    w1_ref/w2_ref : [H, H]  bf16   (VMEM-resident across all grid steps)
    b1_ref/b2_ref : [1, H]  f32
    """
    x_bf = x_ref[...]                                            # bf16 [BT, H]

    # First linear: bf16 MXU matmul, f32 accumulation; f32 epilogue (bias+ReLU).
    h = jnp.dot(x_bf, w1_ref[...], preferred_element_type=jnp.float32)
    h = jnp.maximum(h + b1_ref[...], 0.0)                        # f32 VPU

    # Second linear + bias + residual, fused in the epilogue (all f32).
    y = jnp.dot(h.astype(jnp.bfloat16), w2_ref[...],
                preferred_element_type=jnp.float32)
    out = x_bf.astype(jnp.float32) + y + b2_ref[...]
    o_ref[...] = out.astype(o_ref.dtype)                         # -> bf16 store


def _round_up(v, m):
    return ((v + m - 1) // m) * m


def residual_block(x, w1, b1, w2, b2, *, block_b=1024):
    """x: [B, H] bf16; w1/w2: [H, H] bf16 (in_features, out_features); b: [1, H] f32."""
    B, H = x.shape
    assert H % 128 == 0, "H must be a multiple of 128 for lane-dense tiles"
    assert w1.shape == (H, H) and w2.shape == (H, H)
    assert b1.shape == (1, H) and b2.shape == (1, H)

    # Batch tile: as large as requested, but capped near ceil(B/2) so the
    # parallel batch grid keeps >= 2 steps (v7x has 2 TCs); sublane-aligned.
    bt = max(8, min(block_b, _round_up(pl.cdiv(B, 2), 8)))
    # Partial final block is fine: this op is row-independent, so rows read
    # past B only produce output rows that are masked out of the store.
    grid = (pl.cdiv(B, bt),)

    out = pl.pallas_call(
        residual_mlp_kernel,
        out_shape=jax.ShapeDtypeStruct((B, H), x.dtype),
        grid=grid,
        in_specs=[
            pl.BlockSpec((bt, H), lambda i: (i, 0)),   # x: streams with batch grid
            pl.BlockSpec((H, H), lambda i: (0, 0)),    # W1: VMEM-resident
            pl.BlockSpec((1, H), lambda i: (0, 0)),    # b1: VMEM-resident
            pl.BlockSpec((H, H), lambda i: (0, 0)),    # W2: VMEM-resident
            pl.BlockSpec((1, H), lambda i: (0, 0)),    # b2: VMEM-resident
        ],
        out_specs=pl.BlockSpec((bt, H), lambda i: (i, 0)),
        compiler_params=pltpu.CompilerParams(
            # Batch tiles are independent -> shard across TCs (v7x) / megacore.
            dimension_semantics=("parallel",),
            # Explicit VMEM budget with headroom under v7x's 64 MiB/TC.
            vmem_limit_bytes=48 * 1024 * 1024,
        ),
    )(x, w1, b1, w2, b2)

    return out


def init_params(key, hidden):
    """Init matching PyTorch nn.Linear default U(-1/sqrt(fan_in), +); weights bf16 at rest."""
    k1, k2, k3, k4 = jax.random.split(key, 4)
    bound = 1.0 / jnp.sqrt(hidden)
    w1 = jax.random.uniform(k1, (hidden, hidden), jnp.float32, -bound, bound)
    b1 = jax.random.uniform(k2, (1, hidden), jnp.float32, -bound, bound)
    w2 = jax.random.uniform(k3, (hidden, hidden), jnp.float32, -bound, bound)
    b2 = jax.random.uniform(k4, (1, hidden), jnp.float32, -bound, bound)
    return w1.astype(jnp.bfloat16), b1, w2.astype(jnp.bfloat16), b2


if __name__ == "__main__":
    key = jax.random.PRNGKey(0)
    kx, kp = jax.random.split(key)

    # Lane-dense hidden (multiple of 128); batch large enough to exercise the
    # batch grid (2 tiles of 256 rows) while staying small.
    batch, hidden = 512, 128
    x = jax.random.normal(kx, (batch, hidden), jnp.float32).astype(jnp.bfloat16)
    w1, b1, w2, b2 = init_params(kp, hidden)

    out = residual_block(x, w1, b1, w2, b2)
    out = jax.block_until_ready(out)

    # Pure-JAX reference with the same bf16-matmul / f32-epilogue recipe.
    x32 = x.astype(jnp.float32)
    h_ref = jnp.maximum(
        jnp.dot(x, w1, preferred_element_type=jnp.float32) + b1, 0.0)
    y_ref = jnp.dot(h_ref.astype(jnp.bfloat16), w2,
                    preferred_element_type=jnp.float32) + b2
    ref = x32 + y_ref

    assert out.shape == (batch, hidden)
    assert out.dtype == jnp.bfloat16
    # Kernel matches the reference up to the final bf16 store rounding.
    assert jnp.allclose(out.astype(jnp.float32), ref, atol=5e-2, rtol=5e-2), \
        "mismatch vs reference"

    print("KERNEL_OK")
</pallas_src>

<mosaic_0001>
module attributes {stable_mosaic.version = 11 : i64} {
  func.func @residual_mlp_kernel(%arg0: i32, %arg1: memref<256x128xbf16, #tpu.memory_space<vmem>>, %arg2: memref<128x128xbf16, #tpu.memory_space<vmem>>, %arg3: memref<1x128xf32, #tpu.memory_space<vmem>>, %arg4: memref<128x128xbf16, #tpu.memory_space<vmem>>, %arg5: memref<1x128xf32, #tpu.memory_space<vmem>>, %arg6: memref<256x128xbf16, #tpu.memory_space<vmem>>) attributes {dimension_semantics = [#tpu.dimension_semantics<parallel>], iteration_bounds = array<i64: 2>, scalar_prefetch = 0 : i64, scratch_operands = 0 : i64, tpu.core_type = #tpu.core_type<tc>, window_params = [{transform_indices = @transform_0, window_bounds = array<i64: 256, 128>}, {pipeline_mode = #tpu.pipeline_mode<synchronous>, transform_indices = @transform_1, window_bounds = array<i64: 128, 128>}, {pipeline_mode = #tpu.pipeline_mode<synchronous>, transform_indices = @transform_2, window_bounds = array<i64: 1, 128>}, {pipeline_mode = #tpu.pipeline_mode<synchronous>, transform_indices = @transform_3, window_bounds = array<i64: 128, 128>}, {pipeline_mode = #tpu.pipeline_mode<synchronous>, transform_indices = @transform_4, window_bounds = array<i64: 1, 128>}, {transform_indices = @transform_5, window_bounds = array<i64: 256, 128>}]} {
    %c0 = arith.constant 0 : index
    %c0_0 = arith.constant 0 : index
    %0 = vector.load %arg1[%c0, %c0_0] : memref<256x128xbf16, #tpu.memory_space<vmem>>, vector<256x128xbf16>
    %c0_1 = arith.constant 0 : index
    %c0_2 = arith.constant 0 : index
    %1 = vector.load %arg2[%c0_1, %c0_2] : memref<128x128xbf16, #tpu.memory_space<vmem>>, vector<128x128xbf16>
    %cst = arith.constant dense<0.000000e+00> : vector<256x128xf32>
    %2 = tpu.matmul %0, %1, %cst {dimension_numbers = #tpu.dot_dimension_numbers<[1], [0], [0], [1], [0, 0, 1, 1], [], []>} : vector<256x128xbf16>, vector<128x128xbf16>, vector<256x128xf32> -> vector<256x128xf32>
    %c0_3 = arith.constant 0 : index
    %c0_4 = arith.constant 0 : index
    %3 = vector.load %arg3[%c0_3, %c0_4] : memref<1x128xf32, #tpu.memory_space<vmem>>, vector<1x128xf32>
    %4 = vector.broadcast %3 : vector<1x128xf32> to vector<256x128xf32>
    %5 = arith.addf %2, %4 : vector<256x128xf32>
    %cst_5 = arith.constant 0.000000e+00 : f32
    %6 = vector.broadcast %cst_5 : f32 to vector<256x128xf32>
    %7 = arith.maximumf %5, %6 : vector<256x128xf32>
    %8 = arith.truncf %7 : vector<256x128xf32> to vector<256x128xbf16>
    %c0_6 = arith.constant 0 : index
    %c0_7 = arith.constant 0 : index
    %9 = vector.load %arg4[%c0_6, %c0_7] : memref<128x128xbf16, #tpu.memory_space<vmem>>, vector<128x128xbf16>
    %cst_8 = arith.constant dense<0.000000e+00> : vector<256x128xf32>
    %10 = tpu.matmul %8, %9, %cst_8 {dimension_numbers = #tpu.dot_dimension_numbers<[1], [0], [0], [1], [0, 0, 1, 1], [], []>} : vector<256x128xbf16>, vector<128x128xbf16>, vector<256x128xf32> -> vector<256x128xf32>
    %11 = arith.extf %0 : vector<256x128xbf16> to vector<256x128xf32>
    %12 = arith.addf %11, %10 : vector<256x128xf32>
    %c0_9 = arith.constant 0 : index
    %c0_10 = arith.constant 0 : index
    %13 = vector.load %arg5[%c0_9, %c0_10] : memref<1x128xf32, #tpu.memory_space<vmem>>, vector<1x128xf32>
    %14 = vector.broadcast %13 : vector<1x128xf32> to vector<256x128xf32>
    %15 = arith.addf %12, %14 : vector<256x128xf32>
    %16 = arith.truncf %15 : vector<256x128xf32> to vector<256x128xbf16>
    %c0_11 = arith.constant 0 : index
    %c0_12 = arith.constant 0 : index
    %17 = vector.load %arg6[%c0_11, %c0_12] : memref<256x128xbf16, #tpu.memory_space<vmem>>, vector<256x128xbf16>
    tpu.vector_store %arg6[%c0_11, %c0_12], %16 {strides = array<i32>} : memref<256x128xbf16, #tpu.memory_space<vmem>>, vector<256x128xbf16>,
    return
  }
  func.func @transform_0(%arg0: i32) -> (i32, i32) {
    %c0_i32 = arith.constant 0 : i32
    %c0_i32_0 = arith.constant 0 : i32
    return %arg0, %c0_i32 : i32, i32
  }
  func.func @transform_1(%arg0: i32) -> (i32, i32) {
    %c0_i32 = arith.constant 0 : i32
    %c0_i32_0 = arith.constant 0 : i32
    %c0_i32_1 = arith.constant 0 : i32
    return %c0_i32, %c0_i32_0 : i32, i32
  }
  func.func @transform_2(%arg0: i32) -> (i32, i32) {
    %c0_i32 = arith.constant 0 : i32
    %c0_i32_0 = arith.constant 0 : i32
    %c0_i32_1 = arith.constant 0 : i32
    return %c0_i32, %c0_i32_0 : i32, i32
  }
  func.func @transform_3(%arg0: i32) -> (i32, i32) {
    %c0_i32 = arith.constant 0 : i32
    %c0_i32_0 = arith.constant 0 : i32
    %c0_i32_1 = arith.constant 0 : i32
    return %c0_i32, %c0_i32_0 : i32, i32
  }
  func.func @transform_4(%arg0: i32) -> (i32, i32) {
    %c0_i32 = arith.constant 0 : i32
    %c0_i32_0 = arith.constant 0 : i32
    %c0_i32_1 = arith.constant 0 : i32
    return %c0_i32, %c0_i32_0 : i32, i32
  }
  func.func @transform_5(%arg0: i32) -> (i32, i32) {
    %c0_i32 = arith.constant 0 : i32
    %c0_i32_0 = arith.constant 0 : i32
    return %arg0, %c0_i32 : i32, i32
  }
}

</mosaic_0001>

<llo_original>
// kernel: tpu_custom_call.1
$region0: #{tpu_custom_call.1}
  #allocation0 [shape = 'u32[]', space=smem, size = 0x4, offset = 0x4, fixed_abs, tag = 'smem constant byte address 0x4 - core index']
  #allocation1 [shape = 'u32[144,128]{1,0:T(1,128)}', space=vmem, size = 0x12000, scoped, tag = 'internal scratch']
  %s0 = inlined_call_operand.hbm [shape: bf16[512,128], index: 0, kind: input, shape index: {}]
  %s1 = inlined_call_operand.hbm [shape: bf16[128,128], index: 1, kind: input, shape index: {}]
  %s2 = inlined_call_operand.vmem [shape: f32[1,128], index: 2, kind: input, shape index: {}]
  %s3 = inlined_call_operand.hbm [shape: bf16[128,128], index: 3, kind: input, shape index: {}]
  %s4 = inlined_call_operand.vmem [shape: f32[1,128], index: 4, kind: input, shape index: {}]
  %s5 = inlined_call_operand.hbm [shape: bf16[512,128], index: 5, kind: output, shape index: {}]
  %s6 = sld [smem:[#allocation0]]
  $region65: #{tpu_custom_call.1} parent=0
    _
  %s8 = ssub.s32 1, %s6
  %s9 = scalar_select 0, %s8, %s6
  $region1: #{tpu_custom_call.1} parent=0
    #allocation2 [shape = 'u8[131072]{0}', space=vmem, size = 0x20000, scoped, tag = 'input window, operand 0']
    #allocation3 [shape = 's32[2]{0}', space=sflag, size = 0x8, scoped, tag = 'scoped memory for tpu_custom_call.1']
    #allocation4 [shape = 's32[2]{0}', space=sflag, size = 0x8, scoped, tag = 'scoped memory for tpu_custom_call.1']
    #allocation5 [shape = 'u8[32768]{0}', space=vmem, size = 0x8000, scoped, tag = 'input window, operand 1, single buffered']
    #allocation6 [shape = 's32[1]{0}', space=sflag, size = 0x4, scoped, tag = 'scoped memory for tpu_custom_call.1']
    #allocation7 [shape = 'u8[32768]{0}', space=vmem, size = 0x8000, scoped, tag = 'input window, operand 3, single buffered']
    #allocation8 [shape = 'u8[131072]{0}', space=vmem, size = 0x20000, scoped, tag = 'output window, operand 0']
    %10 = vsyncpa [#allocation3], 0
    %s11 = scalar_lea.sflag [#allocation3], 1
    %12 = vsyncpa %s11, 0
    %13 = vsyncpa [#allocation6], 0
    %14 = vsyncpa [#allocation4], 0
    %s15 = scalar_lea.sflag [#allocation4], 1
    %16 = vsyncpa %s15, 0
    loop: start=0, step=1, limit=4
    $region2: #{tpu_custom_call.1} parent=1 // loop_pre_header
      _
    $region3: #{tpu_custom_call.1} parent=1 // loop_header
      %s18 = sphi 0, %s22
      %p19 = scmp.ge.s32.totalorder %s18, 4
      %s28 = sphi 0, %s30
      %s31 = sphi 0, %s28
      %s32 = sphi 0, %s31
      %s48 = sphi 0, %s32
      %s52 = sphi 0, %s52
      %s54 = sphi 0, %s52
      %s55 = sphi 0, %s54
      %s69 = sphi 0, %s55
      %s73 = sphi 0, %s73
      %s75 = sphi 0, %s73
      %s76 = sphi 0, %s75
      %s90 = sphi 0, %s76
      %s94 = sphi 0, %s94
      %s96 = sphi 0, %s94
      %s97 = sphi 0, %s96
      %s111 = sphi 0, %s97
      %s115 = sphi 0, %s115
      %s117 = sphi 0, %s115
      %s118 = sphi 0, %s117
      %s132 = sphi 0, %s118
      %s138 = sphi 0, %s140
      %s141 = sphi 0, %s138
      %s142 = sphi 0, %s141
      %s158 = sphi 0, %s142
    $region4: #{tpu_custom_call.1} parent=1 // loop_header_branch
      %21 = sbr.rel (%p19) target = $region8
    $region5: #{tpu_custom_call.1} parent=1 // loop_body
      %s23 = ssub.s32 %s18, 1
      %s24 = ssub.s32 %s18, 2
      %s25 = sadd.s32 %s18, 1
      %s26 = ssub.s32 %s18, %s25
      %p27 = scmp.eq.s32.totalorder %s26, 0
      %s29 = sadd.s32 %s28, 1
      %s30 = scalar_select %p27, %s28, %s29
      %p33 = pneg %p27
      %p34 = scmp.eq.s32.totalorder %s18, 1
      %p35 = por %p33, %p34
      %p36 = scmp.ne.s32.totalorder %s28, %s31
      %p37 = scmp.eq.s32.totalorder %s18, 0
      %p38 = por %p36, %p37
      %p39 = scmp.ne.s32.totalorder %s28, %s31
      %p40 = scmp.eq.s32.totalorder %s23, 1
      %p41 = por %p39, %p40
      %p42 = scmp.ne.s32.totalorder %s31, %s32
      %p43 = scmp.eq.s32.totalorder %s23, 0
      %p44 = por %p42, %p43
      %p45 = scmp.ne.s32.totalorder %s31, %s32
      %p46 = scmp.eq.s32.totalorder %s24, 1
      %p47 = por %p45, %p46
      %p49 = scmp.ne.s32.totalorder %s32, %s48
      %p50 = scmp.eq.s32.totalorder %s24, 0
      %p51 = por %p49, %p50
      %s53 = sadd.s32 %s52, 1
      %p56 = scmp.eq.s32.totalorder %s18, 1
      %p57 = scmp.ne.s32.totalorder %s52, %s54
      %p58 = scmp.eq.s32.totalorder %s18, 0
      %p59 = por %p57, %p58
      %p60 = scmp.ne.s32.totalorder %s52, %s54
      %p61 = scmp.eq.s32.totalorder %s23, 1
      %p62 = por %p60, %p61
      %p63 = scmp.ne.s32.totalorder %s54, %s55
      %p64 = scmp.eq.s32.totalorder %s23, 0
      %p65 = por %p63, %p64
      %p66 = scmp.ne.s32.totalorder %s54, %s55
      %p67 = scmp.eq.s32.totalorder %s24, 1
      %p68 = por %p66, %p67
      %p70 = scmp.ne.s32.totalorder %s55, %s69
      %p71 = scmp.eq.s32.totalorder %s24, 0
      %p72 = por %p70, %p71
      %s74 = sadd.s32 %s73, 1
      %p77 = scmp.eq.s32.totalorder %s18, 1
      %p78 = scmp.ne.s32.totalorder %s73, %s75
      %p79 = scmp.eq.s32.totalorder %s18, 0
      %p80 = por %p78, %p79
      %p81 = scmp.ne.s32.totalorder %s73, %s75
      %p82 = scmp.eq.s32.totalorder %s23, 1
      %p83 = por %p81, %p82
      %p84 = scmp.ne.s32.totalorder %s75, %s76
      %p85 = scmp.eq.s32.totalorder %s23, 0
      %p86 = por %p84, %p85
      %p87 = scmp.ne.s32.totalorder %s75, %s76
      %p88 = scmp.eq.s32.totalorder %s24, 1
      %p89 = por %p87, %p88
      %p91 = scmp.ne.s32.totalorder %s76, %s90
      %p92 = scmp.eq.s32.totalorder %s24, 0
      %p93 = por %p91, %p92
      %s95 = sadd.s32 %s94, 1
      %p98 = scmp.eq.s32.totalorder %s18, 1
      %p99 = scmp.ne.s32.totalorder %s94, %s96
      %p100 = scmp.eq.s32.totalorder %s18, 0
      %p101 = por %p99, %p100
      %p102 = scmp.ne.s32.totalorder %s94, %s96
      %p103 = scmp.eq.s32.totalorder %s23, 1
      %p104 = por %p102, %p103
      %p105 = scmp.ne.s32.totalorder %s96, %s97
      %p106 = scmp.eq.s32.totalorder %s23, 0
      %p107 = por %p105, %p106
      %p108 = scmp.ne.s32.totalorder %s96, %s97
      %p109 = scmp.eq.s32.totalorder %s24, 1
      %p110 = por %p108, %p109
      %p112 = scmp.ne.s32.totalorder %s97, %s111
      %p113 = scmp.eq.s32.totalorder %s24, 0
      %p114 = por %p112, %p113
      %s116 = sadd.s32 %s115, 1
      %p119 = scmp.eq.s32.totalorder %s18, 1
      %p120 = scmp.ne.s32.totalorder %s115, %s117
      %p121 = scmp.eq.s32.totalorder %s18, 0
      %p122 = por %p120, %p121
      %p123 = scmp.ne.s32.totalorder %s115, %s117
      %p124 = scmp.eq.s32.totalorder %s23, 1
      %p125 = por %p123, %p124
      %p126 = scmp.ne.s32.totalorder %s117, %s118
      %p127 = scmp.eq.s32.totalorder %s23, 0
      %p128 = por %p126, %p127
      %p129 = scmp.ne.s32.totalorder %s117, %s118
      %p130 = scmp.eq.s32.totalorder %s24, 1
      %p131 = por %p129, %p130
      %p133 = scmp.ne.s32.totalorder %s118, %s132
      %p134 = scmp.eq.s32.totalorder %s24, 0
      %p135 = por %p133, %p134
      %s136 = ssub.s32 %s18, %s25
      %p137 = scmp.eq.s32.totalorder %s136, 0
      %s139 = sadd.s32 %s138, 1
      %s140 = scalar_select %p137, %s138, %s139
      %p143 = pneg %p137
      %p144 = scmp.eq.s32.totalorder %s18, 1
      %p145 = por %p143, %p144
      %p146 = scmp.ne.s32.totalorder %s138, %s141
      %p147 = scmp.eq.s32.totalorder %s18, 0
      %p148 = por %p146, %p147
      %p149 = scmp.ne.s32.totalorder %s138, %s141
      %p150 = scmp.eq.s32.totalorder %s23, 1
      %p151 = por %p149, %p150
      %p152 = scmp.ne.s32.totalorder %s141, %s142
      %p153 = scmp.eq.s32.totalorder %s23, 0
      %p154 = por %p152, %p153
      %p155 = scmp.ne.s32.totalorder %s141, %s142
      %p156 = scmp.eq.s32.totalorder %s24, 1
      %p157 = por %p155, %p156
      %p159 = scmp.ne.s32.totalorder %s142, %s158
      %p160 = scmp.eq.s32.totalorder %s24, 0
      %p161 = por %p159, %p160
      %p162 = scmp.le.s32.totalorder 1, %s18
      %p163 = scmp.lt.s32.totalorder %s18, 3
      %p164 = pnand %p162, %p163
      %p165 = pneg %p164
      // Predicated region
      $region9: #{tpu_custom_call.1} parent=5 // pred_check
        _
      $region10: #{tpu_custom_call.1} parent=5 // pred_check_branch
        %167 = sbr.rel (%p164) target = $region12
      $region11: #{tpu_custom_call.1} parent=5 // pred_region
        %s168 = ssub.s32 %s18, 1
        // Predicated region
        $region13: #{tpu_custom_call.1} parent=11 // pred_check
          %p169 = pneg %p65
        $region14: #{tpu_custom_call.1} parent=11 // pred_check_branch
          %171 = sbr.rel (%p169) target = $region16
        $region15: #{tpu_custom_call.1} parent=11 // pred_region
          %s173 = ssub.s32 1024, 1024
          %174 = vsyncadd [#allocation6], %s173
          %s175 = sshll.u32 [#allocation5], 4
          %s176 = int_to_ptr.vmem [resolvable:$true] %s175
          %181 = dma.hbm_to_vmem [thread:$0]  %s1, 1024, %s176, [#allocation6], 64, 64, 4
        $region16: #{tpu_custom_call.1} parent=11 // pred_fallthru
          _
        // Predicated region
        $region17: #{tpu_custom_call.1} parent=11 // pred_check
          %p182 = pneg %p86
        $region18: #{tpu_custom_call.1} parent=11 // pred_check_branch
          %184 = sbr.rel (%p182) target = $region20
        $region19: #{tpu_custom_call.1} parent=11 // pred_region
          _
        $region20: #{tpu_custom_call.1} parent=11 // pred_fallthru
          _
        // Predicated region
        $region21: #{tpu_custom_call.1} parent=11 // pred_check
          %p185 = pneg %p107
        $region22: #{tpu_custom_call.1} parent=11 // pred_check_branch
          %187 = sbr.rel (%p185) target = $region24
        $region23: #{tpu_custom_call.1} parent=11 // pred_region
          %s189 = ssub.s32 1024, 1024
          %190 = vsyncadd [#allocation6], %s189
          %s191 = sshll.u32 [#allocation7], 4
          %s192 = int_to_ptr.vmem [resolvable:$true] %s191
          %197 = dma.hbm_to_vmem [thread:$0]  %s3, 1024, %s192, [#allocation6], 64, 64, 4
        $region24: #{tpu_custom_call.1} parent=11 // pred_fallthru
          _
        // Predicated region
        $region25: #{tpu_custom_call.1} parent=11 // pred_check
          %p198 = pneg %p128
        $region26: #{tpu_custom_call.1} parent=11 // pred_check_branch
          %200 = sbr.rel (%p198) target = $region28
        $region27: #{tpu_custom_call.1} parent=11 // pred_region
          _
        $region28: #{tpu_custom_call.1} parent=11 // pred_fallthru
          _
      $region12: #{tpu_custom_call.1} parent=5 // pred_fallthru
        _
      %p201 = scmp.lt.s32.totalorder %s18, 2
      // Predicated region
      $region29: #{tpu_custom_call.1} parent=5 // pred_check
        %p202 = pneg %p201
      $region30: #{tpu_custom_call.1} parent=5 // pred_check_branch
        %204 = sbr.rel (%p202) target = $region32
      $region31: #{tpu_custom_call.1} parent=5 // pred_region
        // Predicated region
        $region33: #{tpu_custom_call.1} parent=31 // pred_check
          %p205 = pneg %p38
        $region34: #{tpu_custom_call.1} parent=31 // pred_check_branch
          %207 = sbr.rel (%p205) target = $region36
        $region35: #{tpu_custom_call.1} parent=31 // pred_region
          %s208 = sand.u32 %s28, 1
          %s209 = scalar_lea.sflag [#allocation3], %s208
          %s210 = sand.u32 %s28, 1
          %s211 = smul.addr %s210, 128
          %s212 = scalar_lea.vmem [#allocation2], %s211
          %s213 = smul.u32 32, %s18
          %s215 = ssub.s32 2048, 2048
          %216 = vsyncadd %s209, %s215
          %s217 = smul.addr %s213, 64
          %s218 = scalar_lea.hbm %s0, %s217
          %s219 = sshll.u32 %s212, 4
          %s220 = int_to_ptr.vmem [resolvable:$true] %s219
          %225 = dma.hbm_to_vmem [thread:$0]  %s218, 2048, %s220, %s209, 64, 64, 4
        $region36: #{tpu_custom_call.1} parent=31 // pred_fallthru
          _
      $region32: #{tpu_custom_call.1} parent=5 // pred_fallthru
        _
      %p226 = scmp.le.s32.totalorder 1, %s18
      %p227 = scmp.lt.s32.totalorder %s18, 3
      %p228 = pnand %p226, %p227
      %p229 = pneg %p228
      // Predicated region
      $region37: #{tpu_custom_call.1} parent=5 // pred_check
        _
      $region38: #{tpu_custom_call.1} parent=5 // pred_check_branch
        %231 = sbr.rel (%p228) target = $region40
      $region39: #{tpu_custom_call.1} parent=5 // pred_region
        %s232 = ssub.s32 %s18, 1
        %s233 = sand.u32 %s31, 1
        %s234 = scalar_lea.sflag [#allocation3], %s233
        %s235 = sand.u32 %s31, 1
        %s236 = smul.addr %s235, 128
        %s237 = scalar_lea.vmem [#allocation2], %s236
        // Predicated region
        $region41: #{tpu_custom_call.1} parent=39 // pred_check
          %p238 = pneg %p44
        $region42: #{tpu_custom_call.1} parent=39 // pred_check_branch
          %240 = sbr.rel (%p238) target = $region44
        $region43: #{tpu_custom_call.1} parent=39 // pred_region
          %241 = dma.done %s234, 2048
        $region44: #{tpu_custom_call.1} parent=39 // pred_fallthru
          _
        // Predicated region
        $region45: #{tpu_custom_call.1} parent=39 // pred_check
          %p242 = pneg %p65
        $region46: #{tpu_custom_call.1} parent=39 // pred_check_branch
          %244 = sbr.rel (%p242) target = $region48
        $region47: #{tpu_custom_call.1} parent=39 // pred_region
          %245 = dma.done [#allocation6], 1024
        $region48: #{tpu_custom_call.1} parent=39 // pred_fallthru
          _
        // Predicated region
        $region49: #{tpu_custom_call.1} parent=39 // pred_check
          %p246 = pneg %p107
        $region50: #{tpu_custom_call.1} parent=39 // pred_check_branch
          %248 = sbr.rel (%p246) target = $region52
        $region51: #{tpu_custom_call.1} parent=39 // pred_region
          %249 = dma.done [#allocation6], 1024
        $region52: #{tpu_custom_call.1} parent=39 // pred_fallthru
          _
        %s250 = sand.u32 %s31, 1
        %s251 = scalar_lea.sflag [#allocation3], %s250
        %s252 = sand.u32 %s31, 1
        %s253 = smul.addr %s252, 128
        %s254 = scalar_lea.vmem [#allocation2], %s253
        %p255 = pneg %p44
        %p256 = pneg %p41
        %p257 = pneg %p65
        %p258 = pneg %p62
        %p259 = pneg %p86
        %p260 = pneg %p83
        %p261 = pneg %p107
        %p262 = pneg %p104
        %p263 = pneg %p128
        %p264 = pneg %p125
        %p265 = pneg %p154
        %p266 = pneg %p151
        %s267 = sand.u32 %s141, 1
        %s268 = scalar_lea.sflag [#allocation4], %s267
        %s269 = sand.u32 %s141, 1
        %s270 = smul.addr %s269, 128
        %s271 = scalar_lea.vmem [#allocation8], %s270
        %s272 = smul.u32 32, %s23
        %s273 = smul.u32 32, %s23
        %v275 = vld [vmem:[%s237] sm:$0xf]
        %v276 = vld [vmem:[%s237 + $0x4] sm:$0xf]
        %v277 = vld [vmem:[%s237 + $0x8] sm:$0xf]
        %v278 = vld [vmem:[%s237 + $0xc] sm:$0xf]
        %v279 = vld [vmem:[%s237 + $0x10] sm:$0xf]
        %v280 = vld [vmem:[%s237 + $0x14] sm:$0xf]
        %v281 = vld [vmem:[%s237 + $0x18] sm:$0xf]
        %v282 = vld [vmem:[%s237 + $0x1c] sm:$0xf]
        %v283 = vld [vmem:[%s237 + $0x20] sm:$0xf]
        %v284 = vld [vmem:[%s237 + $0x24] sm:$0xf]
        %v285 = vld [vmem:[%s237 + $0x28] sm:$0xf]
        %v286 = vld [vmem:[%s237 + $0x2c] sm:$0xf]
        %v287 = vld [vmem:[%s237 + $0x30] sm:$0xf]
        %v288 = vld [vmem:[%s237 + $0x34] sm:$0xf]
        %v289 = vld [vmem:[%s237 + $0x38] sm:$0xf]
        %v290 = vld [vmem:[%s237 + $0x3c] sm:$0xf]
        %v291 = vld [vmem:[%s237 + $0x40] sm:$0xf]
        %v292 = vld [vmem:[%s237 + $0x44] sm:$0xf]
        %v293 = vld [vmem:[%s237 + $0x48] sm:$0xf]
        %v294 = vld [vmem:[%s237 + $0x4c] sm:$0xf]
        %v295 = vld [vmem:[%s237 + $0x50] sm:$0xf]
        %v296 = vld [vmem:[%s237 + $0x54] sm:$0xf]
        %v297 = vld [vmem:[%s237 + $0x58] sm:$0xf]
        %v298 = vld [vmem:[%s237 + $0x5c] sm:$0xf]
        %v299 = vld [vmem:[%s237 + $0x60] sm:$0xf]
        %v300 = vld [vmem:[%s237 + $0x64] sm:$0xf]
        %v301 = vld [vmem:[%s237 + $0x68] sm:$0xf]
        %v302 = vld [vmem:[%s237 + $0x6c] sm:$0xf]
        %v303 = vld [vmem:[%s237 + $0x70] sm:$0xf]
        %v304 = vld [vmem:[%s237 + $0x74] sm:$0xf]
        %v305 = vld [vmem:[%s237 + $0x78] sm:$0xf]
        %v306 = vld [vmem:[%s237 + $0x7c] sm:$0xf]
        %v307 = vld [vmem:[#allocation5] sm:$0xf]
        %v308 = vld [vmem:[#allocation5 + $0x4] sm:$0xf]
        %v309 = vld [vmem:[#allocation5 + $0x8] sm:$0xf]
        %v310 = vld [vmem:[#allocation5 + $0xc] sm:$0xf]
        %v311 = vld [vmem:[#allocation5 + $0x10] sm:$0xf]
        %v312 = vld [vmem:[#allocation5 + $0x14] sm:$0xf]
        %v313 = vld [vmem:[#allocation5 + $0x18] sm:$0xf]
        %v314 = vld [vmem:[#allocation5 + $0x1c] sm:$0xf]
        %v315 = vld [vmem:[#allocation5 + $0x20] sm:$0xf]
        %v316 = vld [vmem:[#allocation5 + $0x24] sm:$0xf]
        %v317 = vld [vmem:[#allocation5 + $0x28] sm:$0xf]
        %v318 = vld [vmem:[#allocation5 + $0x2c] sm:$0xf]
        %v319 = vld [vmem:[#allocation5 + $0x30] sm:$0xf]
        %v320 = vld [vmem:[#allocation5 + $0x34] sm:$0xf]
        %v321 = vld [vmem:[#allocation5 + $0x38] sm:$0xf]
        %v322 = vld [vmem:[#allocation5 + $0x3c] sm:$0xf]
        %v323 = vld [vmem:[%s2] sm:$0x1]
        %v325 = vlaneseq
        %v326 = vshrl.u32 %v325, 7
        %v327 = vsub.s32 0, %v326
        %v328 = vrot.slane %v323, %v327
        %v362 = vunpack.c.l.b16 %v275
        %v363 = vunpack.c.l.b16 %v276
        %v364 = vunpack.c.l.b16 %v277
        %v365 = vunpack.c.l.b16 %v278
        %v366 = vunpack.c.l.b16 %v279
        %v367 = vunpack.c.l.b16 %v280
        %v368 = vunpack.c.l.b16 %v281
        %v369 = vunpack.c.l.b16 %v282
        %v370 = vunpack.c.l.b16 %v283
        %v371 = vunpack.c.l.b16 %v284
        %v372 = vunpack.c.l.b16 %v285
        %v373 = vunpack.c.l.b16 %v286
        %v374 = vunpack.c.l.b16 %v287
        %v375 = vunpack.c.l.b16 %v288
        %v376 = vunpack.c.l.b16 %v289
        %v377 = vunpack.c.l.b16 %v290
        %v378 = vunpack.c.l.b16 %v291
        %v379 = vunpack.c.l.b16 %v292
        %v380 = vunpack.c.l.b16 %v293
        %v381 = vunpack.c.l.b16 %v294
        %v382 = vunpack.c.l.b16 %v295
        %v383 = vunpack.c.l.b16 %v296
        %v384 = vunpack.c.l.b16 %v297
        %v385 = vunpack.c.l.b16 %v298
        %v386 = vunpack.c.l.b16 %v299
        %v387 = vunpack.c.l.b16 %v300
        %v388 = vunpack.c.l.b16 %v301
        %v389 = vunpack.c.l.b16 %v302
        %v390 = vunpack.c.l.b16 %v303
        %v391 = vunpack.c.l.b16 %v304
        %v392 = vunpack.c.l.b16 %v305
        %v393 = vunpack.c.l.b16 %v306
        %v394 = vpack.c.b16 %v363, %v362
        %v395 = vpack.c.b16 %v365, %v364
        %v396 = vpack.c.b16 %v367, %v366
        %v397 = vpack.c.b16 %v369, %v368
        %v398 = vpack.c.b16 %v371, %v370
        %v399 = vpack.c.b16 %v373, %v372
        %v400 = vpack.c.b16 %v375, %v374
        %v401 = vpack.c.b16 %v377, %v376
        %v402 = vpack.c.b16 %v379, %v378
        %v403 = vpack.c.b16 %v381, %v380
        %v404 = vpack.c.b16 %v383, %v382
        %v405 = vpack.c.b16 %v385, %v384
        %v406 = vpack.c.b16 %v387, %v386
        %v407 = vpack.c.b16 %v389, %v388
        %v408 = vpack.c.b16 %v391, %v390
        %v409 = vpack.c.b16 %v393, %v392
        %v442 = vunpack.c.l.b16 %v307
        %v443 = vunpack.c.l.b16 %v308
        %v444 = vunpack.c.l.b16 %v309
        %v445 = vunpack.c.l.b16 %v310
        %v446 = vunpack.c.l.b16 %v311
        %v447 = vunpack.c.l.b16 %v312
        %v448 = vunpack.c.l.b16 %v313
        %v449 = vunpack.c.l.b16 %v314
        %v450 = vunpack.c.l.b16 %v315
        %v451 = vunpack.c.l.b16 %v316
        %v452 = vunpack.c.l.b16 %v317
        %v453 = vunpack.c.l.b16 %v318
        %v454 = vunpack.c.l.b16 %v319
        %v455 = vunpack.c.l.b16 %v320
        %v456 = vunpack.c.l.b16 %v321
        %v457 = vunpack.c.l.b16 %v322
        %v458 = vpack.c.b16 %v443, %v442
        %v459 = vpack.c.b16 %v445, %v444
        %v460 = vpack.c.b16 %v447, %v446
        %v461 = vpack.c.b16 %v449, %v448
        %v462 = vpack.c.b16 %v451, %v450
        %v463 = vpack.c.b16 %v453, %v452
        %v464 = vpack.c.b16 %v455, %v454
        %v465 = vpack.c.b16 %v457, %v456
        %474 = vmatprep.subr.bf16.mxu0 0
        %475 = vmatpush1.bf16.msra.mxu0 %v458
        %476 = vmatprep.subr.bf16.mxu0 0
        %477 = vmatpush1.bf16.msra.mxu0 %v459
        %478 = vmatprep.subr.bf16.mxu0 0
        %479 = vmatpush1.bf16.msra.mxu0 %v460
        %480 = vmatprep.subr.bf16.mxu0 0
        %481 = vmatpush1.bf16.msra.mxu0 %v461
        %482 = vmatprep.subr.bf16.mxu0 0
        %483 = vmatpush1.bf16.msra.mxu0 %v462
        %484 = vmatprep.subr.bf16.mxu0 0
        %485 = vmatpush1.bf16.msra.mxu0 %v463
        %486 = vmatprep.subr.bf16.mxu0 0
        %487 = vmatpush1.bf16.msra.mxu0 %v464
        %488 = vmatprep.subr.bf16.mxu0 0
        %489 = vmatpush1.bf16.msra.mxu0 %v465
        %490 = vmatprep.subr.bf16.mxu0 0
        %491 = vmatpush1.bf16.msra.mxu0 0
        %492 = vmatprep.subr.bf16.mxu0 0
        %493 = vmatpush1.bf16.msra.mxu0 0
        %494 = vmatprep.subr.bf16.mxu0 0
        %495 = vmatpush1.bf16.msra.mxu0 0
        %496 = vmatprep.subr.bf16.mxu0 0
        %497 = vmatpush1.bf16.msra.mxu0 0
        %498 = vmatprep.subr.bf16.mxu0 0
        %499 = vmatpush1.bf16.msra.mxu0 0
        %500 = vmatprep.subr.bf16.mxu0 0
        %501 = vmatpush1.bf16.msra.mxu0 0
        %502 = vmatprep.subr.bf16.mxu0 0
        %503 = vmatpush1.bf16.msra.mxu0 0
        %504 = vmatprep.subr.bf16.mxu0 0
        %505 = vmatpush1.bf16.msra.mxu0 0
        %506 = vmatprep.mubr.bf16.mxu0 0
        %507 = vmatmul.mubr.bf16.gmra.mrb[0].mxu0 %v394
        %v508 = vpop.f32.mrb[0].mxu0
        %v509 = vadd.f32 %v328, %v508
        %v510 = vpop.f32.mrb[0].mxu0
        %v511 = vpop.f32.mrb[0].mxu0
        %v512 = vadd.f32 %v328, %v511
        %v513 = vpop.f32.mrb[0].mxu0
        %514 = vmatprep.mubr.bf16.mxu0 0
        %515 = vmatmul.mubr.bf16.gmra.mrb[0].mxu0 %v395
        %v516 = vpop.f32.mrb[0].mxu0
        %v517 = vadd.f32 %v328, %v516
        %v518 = vpop.f32.mrb[0].mxu0
        %v519 = vpop.f32.mrb[0].mxu0
        %v520 = vadd.f32 %v328, %v519
        %v521 = vpop.f32.mrb[0].mxu0
        %522 = vmatprep.mubr.bf16.mxu0 0
        %523 = vmatmul.mubr.bf16.gmra.mrb[0].mxu0 %v396
        %v524 = vpop.f32.mrb[0].mxu0
        %v525 = vadd.f32 %v328, %v524
        %v526 = vpop.f32.mrb[0].mxu0
        %v527 = vpop.f32.mrb[0].mxu0
        %v528 = vadd.f32 %v328, %v527
        %v529 = vpop.f32.mrb[0].mxu0
        %530 = vmatprep.mubr.bf16.mxu0 0
        %531 = vmatmul.mubr.bf16.gmra.mrb[0].mxu0 %v397
        %v532 = vpop.f32.mrb[0].mxu0
        %v533 = vadd.f32 %v328, %v532
        %v534 = vpop.f32.mrb[0].mxu0
        %v535 = vpop.f32.mrb[0].mxu0
        %v536 = vadd.f32 %v328, %v535
        %v537 = vpop.f32.mrb[0].mxu0
        %538 = vmatprep.mubr.bf16.mxu0 0
        %539 = vmatmul.mubr.bf16.gmra.mrb[0].mxu0 %v398
        %v540 = vpop.f32.mrb[0].mxu0
        %v541 = vadd.f32 %v328, %v540
        %v542 = vpop.f32.mrb[0].mxu0
        %v543 = vpop.f32.mrb[0].mxu0
        %v544 = vadd.f32 %v328, %v543
        %v545 = vpop.f32.mrb[0].mxu0
        %546 = vmatprep.mubr.bf16.mxu0 0
        %547 = vmatmul.mubr.bf16.gmra.mrb[0].mxu0 %v399
        %v548 = vpop.f32.mrb[0].mxu0
        %v549 = vadd.f32 %v328, %v548
        %v550 = vpop.f32.mrb[0].mxu0
        %v551 = vpop.f32.mrb[0].mxu0
        %v552 = vadd.f32 %v328, %v551
        %v553 = vpop.f32.mrb[0].mxu0
        %554 = vmatprep.mubr.bf16.mxu0 0
        %555 = vmatmul.mubr.bf16.gmra.mrb[0].mxu0 %v400
        %v556 = vpop.f32.mrb[0].mxu0
        %v557 = vadd.f32 %v328, %v556
        %v558 = vpop.f32.mrb[0].mxu0
        %v559 = vpop.f32.mrb[0].mxu0
        %v560 = vadd.f32 %v328, %v559
        %v561 = vpop.f32.mrb[0].mxu0
        %562 = vmatprep.mubr.bf16.mxu0 0
        %563 = vmatmul.mubr.bf16.gmra.mrb[0].mxu0 %v401
        %v564 = vpop.f32.mrb[0].mxu0
        %v565 = vadd.f32 %v328, %v564
        %v566 = vpop.f32.mrb[0].mxu0
        %v567 = vpop.f32.mrb[0].mxu0
        %v568 = vadd.f32 %v328, %v567
        %v569 = vpop.f32.mrb[0].mxu0
        %570 = vmatprep.mubr.bf16.mxu0 0
        %571 = vmatmul.mubr.bf16.gmra.mrb[0].mxu0 %v402
        %v572 = vpop.f32.mrb[0].mxu0
        %v573 = vadd.f32 %v328, %v572
        %v574 = vpop.f32.mrb[0].mxu0
        %v575 = vpop.f32.mrb[0].mxu0
        %v576 = vadd.f32 %v328, %v575
        %v577 = vpop.f32.mrb[0].mxu0
        %578 = vmatprep.mubr.bf16.mxu0 0
        %579 = vmatmul.mubr.bf16.gmra.mrb[0].mxu0 %v403
        %v580 = vpop.f32.mrb[0].mxu0
        %v581 = vadd.f32 %v328, %v580
        %v582 = vpop.f32.mrb[0].mxu0
        %v583 = vpop.f32.mrb[0].mxu0
        %v584 = vadd.f32 %v328, %v583
        %v585 = vpop.f32.mrb[0].mxu0
        %586 = vmatprep.mubr.bf16.mxu0 0
        %587 = vmatmul.mubr.bf16.gmra.mrb[0].mxu0 %v404
        %v588 = vpop.f32.mrb[0].mxu0
        %v589 = vadd.f32 %v328, %v588
        %v590 = vpop.f32.mrb[0].mxu0
        %v591 = vpop.f32.mrb[0].mxu0
        %v592 = vadd.f32 %v328, %v591
        %v593 = vpop.f32.mrb[0].mxu0
        %594 = vmatprep.mubr.bf16.mxu0 0
        %595 = vmatmul.mubr.bf16.gmra.mrb[0].mxu0 %v405
        %v596 = vpop.f32.mrb[0].mxu0
        %v597 = vadd.f32 %v328, %v596
        %v598 = vpop.f32.mrb[0].mxu0
        %v599 = vpop.f32.mrb[0].mxu0
        %v600 = vadd.f32 %v328, %v599
        %v601 = vpop.f32.mrb[0].mxu0
        %602 = vmatprep.mubr.bf16.mxu0 0
        %603 = vmatmul.mubr.bf16.gmra.mrb[0].mxu0 %v406
        %v604 = vpop.f32.mrb[0].mxu0
        %v605 = vadd.f32 %v328, %v604
        %v606 = vpop.f32.mrb[0].mxu0
        %v607 = vpop.f32.mrb[0].mxu0
        %v608 = vadd.f32 %v328, %v607
        %v609 = vpop.f32.mrb[0].mxu0
        %610 = vmatprep.mubr.bf16.mxu0 0
        %611 = vmatmul.mubr.bf16.gmra.mrb[0].mxu0 %v407
        %v612 = vpop.f32.mrb[0].mxu0
        %v613 = vadd.f32 %v328, %v612
        %v614 = vpop.f32.mrb[0].mxu0
        %v615 = vpop.f32.mrb[0].mxu0
        %v616 = vadd.f32 %v328, %v615
        %v617 = vpop.f32.mrb[0].mxu0
        %618 = vmatprep.mubr.bf16.mxu0 0
        %619 = vmatmul.mubr.bf16.gmra.mrb[0].mxu0 %v408
        %v620 = vpop.f32.mrb[0].mxu0
        %v621 = vadd.f32 %v328, %v620
        %v622 = vpop.f32.mrb[0].mxu0
        %v623 = vpop.f32.mrb[0].mxu0
        %v624 = vadd.f32 %v328, %v623
        %v625 = vpop.f32.mrb[0].mxu0
        %626 = vmatprep.mubr.bf16.mxu0 0
        %627 = vmatmul.mubr.bf16.gmra.mrb[0].mxu0 %v409
        %v628 = vpop.f32.mrb[0].mxu0
        %v629 = vadd.f32 %v328, %v628
        %v630 = vpop.f32.mrb[0].mxu0
        %v631 = vpop.f32.mrb[0].mxu0
        %v632 = vadd.f32 %v328, %v631
        %v633 = vpop.f32.mrb[0].mxu0
        %634 = vdwg.mxu0
        %v635 = vmax.f32 %v509, 0.0
        %v636 = vmax.f32 %v512, 0.0
        %v637 = vmax.f32 %v517, 0.0
        %v638 = vmax.f32 %v520, 0.0
        %v639 = vmax.f32 %v525, 0.0
        %v640 = vmax.f32 %v528, 0.0
        %v641 = vmax.f32 %v533, 0.0
        %v642 = vmax.f32 %v536, 0.0
        %v643 = vmax.f32 %v541, 0.0
        %v644 = vmax.f32 %v544, 0.0
        %v645 = vmax.f32 %v549, 0.0
        %v646 = vmax.f32 %v552, 0.0
        %v647 = vmax.f32 %v557, 0.0
        %v648 = vmax.f32 %v560, 0.0
        %v649 = vmax.f32 %v565, 0.0
        %v650 = vmax.f32 %v568, 0.0
        %v651 = vmax.f32 %v573, 0.0
        %v652 = vmax.f32 %v576, 0.0
        %v653 = vmax.f32 %v581, 0.0
        %v654 = vmax.f32 %v584, 0.0
        %v655 = vmax.f32 %v589, 0.0
        %v656 = vmax.f32 %v592, 0.0
        %v657 = vmax.f32 %v597, 0.0
        %v658 = vmax.f32 %v600, 0.0
        %v659 = vmax.f32 %v605, 0.0
        %v660 = vmax.f32 %v608, 0.0
        %v661 = vmax.f32 %v613, 0.0
        %v662 = vmax.f32 %v616, 0.0
        %v663 = vmax.f32 %v621, 0.0
        %v664 = vmax.f32 %v624, 0.0
        %v665 = vmax.f32 %v629, 0.0
        %v666 = vmax.f32 %v632, 0.0
        %v667 = vpack.c.bf16 %v636, %v635
        %v668 = vpack.c.bf16 %v638, %v637
        %v669 = vpack.c.bf16 %v640, %v639
        %v670 = vpack.c.bf16 %v642, %v641
        %v671 = vpack.c.bf16 %v644, %v643
        %v672 = vpack.c.bf16 %v646, %v645
        %v673 = vpack.c.bf16 %v648, %v647
        %v674 = vpack.c.bf16 %v650, %v649
        %v675 = vpack.c.bf16 %v652, %v651
        %v676 = vpack.c.bf16 %v654, %v653
        %v677 = vpack.c.bf16 %v656, %v655
        %v678 = vpack.c.bf16 %v658, %v657
        %v679 = vpack.c.bf16 %v660, %v659
        %v680 = vpack.c.bf16 %v662, %v661
        %v681 = vpack.c.bf16 %v664, %v663
        %v682 = vpack.c.bf16 %v666, %v665
        %v683 = vld [vmem:[#allocation7] sm:$0xf]
        %v684 = vld [vmem:[#allocation7 + $0x4] sm:$0xf]
        %v685 = vld [vmem:[#allocation7 + $0x8] sm:$0xf]
        %v686 = vld [vmem:[#allocation7 + $0xc] sm:$0xf]
        %v687 = vld [vmem:[#allocation7 + $0x10] sm:$0xf]
        %v688 = vld [vmem:[#allocation7 + $0x14] sm:$0xf]
        %v689 = vld [vmem:[#allocation7 + $0x18] sm:$0xf]
        %v690 = vld [vmem:[#allocation7 + $0x1c] sm:$0xf]
        %v691 = vld [vmem:[#allocation7 + $0x20] sm:$0xf]
        %v692 = vld [vmem:[#allocation7 + $0x24] sm:$0xf]
        %v693 = vld [vmem:[#allocation7 + $0x28] sm:$0xf]
        %v694 = vld [vmem:[#allocation7 + $0x2c] sm:$0xf]
        %v695 = vld [vmem:[#allocation7 + $0x30] sm:$0xf]
        %v696 = vld [vmem:[#allocation7 + $0x34] sm:$0xf]
        %v697 = vld [vmem:[#allocation7 + $0x38] sm:$0xf]
        %v698 = vld [vmem:[#allocation7 + $0x3c] sm:$0xf]
        %v715 = vunpack.c.l.b16 %v683
        %v716 = vunpack.c.l.b16 %v684
        %v717 = vunpack.c.l.b16 %v685
        %v718 = vunpack.c.l.b16 %v686
        %v719 = vunpack.c.l.b16 %v687
        %v720 = vunpack.c.l.b16 %v688
        %v721 = vunpack.c.l.b16 %v689
        %v722 = vunpack.c.l.b16 %v690
        %v723 = vunpack.c.l.b16 %v691
        %v724 = vunpack.c.l.b16 %v692
        %v725 = vunpack.c.l.b16 %v693
        %v726 = vunpack.c.l.b16 %v694
        %v727 = vunpack.c.l.b16 %v695
        %v728 = vunpack.c.l.b16 %v696
        %v729 = vunpack.c.l.b16 %v697
        %v730 = vunpack.c.l.b16 %v698
        %v731 = vpack.c.b16 %v716, %v715
        %v732 = vpack.c.b16 %v718, %v717
        %v733 = vpack.c.b16 %v720, %v719
        %v734 = vpack.c.b16 %v722, %v721
        %v735 = vpack.c.b16 %v724, %v723
        %v736 = vpack.c.b16 %v726, %v725
        %v737 = vpack.c.b16 %v728, %v727
        %v738 = vpack.c.b16 %v730, %v729
        %747 = vmatprep.subr.bf16.mxu0 0
        %748 = vmatpush1.bf16.msra.mxu0 %v731
        %749 = vmatprep.subr.bf16.mxu0 0
        %750 = vmatpush1.bf16.msra.mxu0 %v732
        %751 = vmatprep.subr.bf16.mxu0 0
        %752 = vmatpush1.bf16.msra.mxu0 %v733
        %753 = vmatprep.subr.bf16.mxu0 0
        %754 = vmatpush1.bf16.msra.mxu0 %v734
        %755 = vmatprep.subr.bf16.mxu0 0
        %756 = vmatpush1.bf16.msra.mxu0 %v735
        %757 = vmatprep.subr.bf16.mxu0 0
        %758 = vmatpush1.bf16.msra.mxu0 %v736
        %759 = vmatprep.subr.bf16.mxu0 0
        %760 = vmatpush1.bf16.msra.mxu0 %v737
        %761 = vmatprep.subr.bf16.mxu0 0
        %762 = vmatpush1.bf16.msra.mxu0 %v738
        %763 = vmatprep.subr.bf16.mxu0 0
        %764 = vmatpush1.bf16.msra.mxu0 0
        %765 = vmatprep.subr.bf16.mxu0 0
        %766 = vmatpush1.bf16.msra.mxu0 0
        %767 = vmatprep.subr.bf16.mxu0 0
        %768 = vmatpush1.bf16.msra.mxu0 0
        %769 = vmatprep.subr.bf16.mxu0 0
        %770 = vmatpush1.bf16.msra.mxu0 0
        %771 = vmatprep.subr.bf16.mxu0 0
        %772 = vmatpush1.bf16.msra.mxu0 0
        %773 = vmatprep.subr.bf16.mxu0 0
        %774 = vmatpush1.bf16.msra.mxu0 0
        %775 = vmatprep.subr.bf16.mxu0 0
        %776 = vmatpush1.bf16.msra.mxu0 0
        %777 = vmatprep.subr.bf16.mxu0 0
        %778 = vmatpush1.bf16.msra.mxu0 0
        %779 = vmatprep.mubr.bf16.mxu0 0
        %780 = vmatmul.mubr.bf16.gmra.mrb[0].mxu0 %v667
        %v781 = vpop.f32.mrb[0].mxu0
        %v782 = vadd.f32 0.0, %v781
        %v783 = vpop.f32.mrb[0].mxu0
        %v784 = vpop.f32.mrb[0].mxu0
        %v785 = vadd.f32 0.0, %v784
        %v786 = vpop.f32.mrb[0].mxu0
        %787 = vmatprep.mubr.bf16.mxu0 0
        %788 = vmatmul.mubr.bf16.gmra.mrb[0].mxu0 %v668
        %v789 = vpop.f32.mrb[0].mxu0
        %v790 = vadd.f32 0.0, %v789
        %v791 = vpop.f32.mrb[0].mxu0
        %v792 = vpop.f32.mrb[0].mxu0
        %v793 = vadd.f32 0.0, %v792
        %v794 = vpop.f32.mrb[0].mxu0
        %795 = vmatprep.mubr.bf16.mxu0 0
        %796 = vmatmul.mubr.bf16.gmra.mrb[0].mxu0 %v669
        %v797 = vpop.f32.mrb[0].mxu0
        %v798 = vadd.f32 0.0, %v797
        %v799 = vpop.f32.mrb[0].mxu0
        %v800 = vpop.f32.mrb[0].mxu0
        %v801 = vadd.f32 0.0, %v800
        %v802 = vpop.f32.mrb[0].mxu0
        %803 = vmatprep.mubr.bf16.mxu0 0
        %804 = vmatmul.mubr.bf16.gmra.mrb[0].mxu0 %v670
        %v805 = vpop.f32.mrb[0].mxu0
        %v806 = vadd.f32 0.0, %v805
        %v807 = vpop.f32.mrb[0].mxu0
        %v808 = vpop.f32.mrb[0].mxu0
        %v809 = vadd.f32 0.0, %v808
        %v810 = vpop.f32.mrb[0].mxu0
        %811 = vmatprep.mubr.bf16.mxu0 0
        %812 = vmatmul.mubr.bf16.gmra.mrb[0].mxu0 %v671
        %v813 = vpop.f32.mrb[0].mxu0
        %v814 = vadd.f32 0.0, %v813
        %v815 = vpop.f32.mrb[0].mxu0
        %v816 = vpop.f32.mrb[0].mxu0
        %v817 = vadd.f32 0.0, %v816
        %v818 = vpop.f32.mrb[0].mxu0
        %819 = vmatprep.mubr.bf16.mxu0 0
        %820 = vmatmul.mubr.bf16.gmra.mrb[0].mxu0 %v672
        %v821 = vpop.f32.mrb[0].mxu0
        %v822 = vadd.f32 0.0, %v821
        %v823 = vpop.f32.mrb[0].mxu0
        %v824 = vpop.f32.mrb[0].mxu0
        %v825 = vadd.f32 0.0, %v824
        %v826 = vpop.f32.mrb[0].mxu0
        %827 = vmatprep.mubr.bf16.mxu0 0
        %828 = vmatmul.mubr.bf16.gmra.mrb[0].mxu0 %v673
        %v829 = vpop.f32.mrb[0].mxu0
        %v830 = vadd.f32 0.0, %v829
        %v831 = vpop.f32.mrb[0].mxu0
        %v832 = vpop.f32.mrb[0].mxu0
        %v833 = vadd.f32 0.0, %v832
        %v834 = vpop.f32.mrb[0].mxu0
        %835 = vmatprep.mubr.bf16.mxu0 0
        %836 = vmatmul.mubr.bf16.gmra.mrb[0].mxu0 %v674
        %v837 = vpop.f32.mrb[0].mxu0
        %v838 = vadd.f32 0.0, %v837
        %v839 = vpop.f32.mrb[0].mxu0
        %v840 = vpop.f32.mrb[0].mxu0
        %v841 = vadd.f32 0.0, %v840
        %v842 = vpop.f32.mrb[0].mxu0
        %843 = vmatprep.mubr.bf16.mxu0 0
        %844 = vmatmul.mubr.bf16.gmra.mrb[0].mxu0 %v675
        %v845 = vpop.f32.mrb[0].mxu0
        %v846 = vadd.f32 0.0, %v845
        %v847 = vpop.f32.mrb[0].mxu0
        %v848 = vpop.f32.mrb[0].mxu0
        %v849 = vadd.f32 0.0, %v848
        %v850 = vpop.f32.mrb[0].mxu0
        %851 = vmatprep.mubr.bf16.mxu0 0
        %852 = vmatmul.mubr.bf16.gmra.mrb[0].mxu0 %v676
        %v853 = vpop.f32.mrb[0].mxu0
        %v854 = vadd.f32 0.0, %v853
        %v855 = vpop.f32.mrb[0].mxu0
        %v856 = vpop.f32.mrb[0].mxu0
        %v857 = vadd.f32 0.0, %v856
        %v858 = vpop.f32.mrb[0].mxu0
        %859 = vmatprep.mubr.bf16.mxu0 0
        %860 = vmatmul.mubr.bf16.gmra.mrb[0].mxu0 %v677
        %v861 = vpop.f32.mrb[0].mxu0
        %v862 = vadd.f32 0.0, %v861
        %v863 = vpop.f32.mrb[0].mxu0
        %v864 = vpop.f32.mrb[0].mxu0
        %v865 = vadd.f32 0.0, %v864
        %v866 = vpop.f32.mrb[0].mxu0
        %867 = vmatprep.mubr.bf16.mxu0 0
        %868 = vmatmul.mubr.bf16.gmra.mrb[0].mxu0 %v678
        %v869 = vpop.f32.mrb[0].mxu0
        %v870 = vadd.f32 0.0, %v869
        %v871 = vpop.f32.mrb[0].mxu0
        %v872 = vpop.f32.mrb[0].mxu0
        %v873 = vadd.f32 0.0, %v872
        %v874 = vpop.f32.mrb[0].mxu0
        %875 = vmatprep.mubr.bf16.mxu0 0
        %876 = vmatmul.mubr.bf16.gmra.mrb[0].mxu0 %v679
        %v877 = vpop.f32.mrb[0].mxu0
        %v878 = vadd.f32 0.0, %v877
        %v879 = vpop.f32.mrb[0].mxu0
        %v880 = vpop.f32.mrb[0].mxu0
        %v881 = vadd.f32 0.0, %v880
        %v882 = vpop.f32.mrb[0].mxu0
        %883 = vmatprep.mubr.bf16.mxu0 0
        %884 = vmatmul.mubr.bf16.gmra.mrb[0].mxu0 %v680
        %v885 = vpop.f32.mrb[0].mxu0
        %v886 = vadd.f32 0.0, %v885
        %v887 = vpop.f32.mrb[0].mxu0
        %v888 = vpop.f32.mrb[0].mxu0
        %v889 = vadd.f32 0.0, %v888
        %v890 = vpop.f32.mrb[0].mxu0
        %891 = vmatprep.mubr.bf16.mxu0 0
        %892 = vmatmul.mubr.bf16.gmra.mrb[0].mxu0 %v681
        %v893 = vpop.f32.mrb[0].mxu0
        %v894 = vadd.f32 0.0, %v893
        %v895 = vpop.f32.mrb[0].mxu0
        %v896 = vpop.f32.mrb[0].mxu0
        %v897 = vadd.f32 0.0, %v896
        %v898 = vpop.f32.mrb[0].mxu0
        %899 = vmatprep.mubr.bf16.mxu0 0
        %900 = vmatmul.mubr.bf16.gmra.mrb[0].mxu0 %v682
        %v901 = vpop.f32.mrb[0].mxu0
        %v902 = vadd.f32 0.0, %v901
        %v903 = vpop.f32.mrb[0].mxu0
        %v904 = vpop.f32.mrb[0].mxu0
        %v905 = vadd.f32 0.0, %v904
        %v906 = vpop.f32.mrb[0].mxu0
        %907 = vdwg.mxu0
        %v908 = vunpack.c.l.bf16 %v275
        %v909 = vunpack.c.l.bf16 %v276
        %v910 = vunpack.c.l.bf16 %v277
        %v911 = vunpack.c.l.bf16 %v278
        %v912 = vunpack.c.l.bf16 %v279
        %v913 = vunpack.c.l.bf16 %v280
        %v914 = vunpack.c.l.bf16 %v281
        %v915 = vunpack.c.l.bf16 %v282
        %v916 = vunpack.c.l.bf16 %v283
        %v917 = vunpack.c.l.bf16 %v284
        %v918 = vunpack.c.l.bf16 %v285
        %v919 = vunpack.c.l.bf16 %v286
        %v920 = vunpack.c.l.bf16 %v287
        %v921 = vunpack.c.l.bf16 %v288
        %v922 = vunpack.c.l.bf16 %v289
        %v923 = vunpack.c.l.bf16 %v290
        %v924 = vunpack.c.l.bf16 %v291
        %v925 = vunpack.c.l.bf16 %v292
        %v926 = vunpack.c.l.bf16 %v293
        %v927 = vunpack.c.l.bf16 %v294
        %v928 = vunpack.c.l.bf16 %v295
        %v929 = vunpack.c.l.bf16 %v296
        %v930 = vunpack.c.l.bf16 %v297
        %v931 = vunpack.c.l.bf16 %v298
        %v932 = vunpack.c.l.bf16 %v299
        %v933 = vunpack.c.l.bf16 %v300
        %v934 = vunpack.c.l.bf16 %v301
        %v935 = vunpack.c.l.bf16 %v302
        %v936 = vunpack.c.l.bf16 %v303
        %v937 = vunpack.c.l.bf16 %v304
        %v938 = vunpack.c.l.bf16 %v305
        %v939 = vunpack.c.l.bf16 %v306
        %v940 = vadd.f32 %v908, %v782
        %v941 = vadd.f32 %v909, %v785
        %v942 = vadd.f32 %v910, %v790
        %v943 = vadd.f32 %v911, %v793
        %v944 = vadd.f32 %v912, %v798
        %v945 = vadd.f32 %v913, %v801
        %v946 = vadd.f32 %v914, %v806
        %v947 = vadd.f32 %v915, %v809
        %v948 = vadd.f32 %v916, %v814
        %v949 = vadd.f32 %v917, %v817
        %v950 = vadd.f32 %v918, %v822
        %v951 = vadd.f32 %v919, %v825
        %v952 = vadd.f32 %v920, %v830
        %v953 = vadd.f32 %v921, %v833
        %v954 = vadd.f32 %v922, %v838
        %v955 = vadd.f32 %v923, %v841
        %v956 = vadd.f32 %v924, %v846
        %v957 = vadd.f32 %v925, %v849
        %v958 = vadd.f32 %v926, %v854
        %v959 = vadd.f32 %v927, %v857
        %v960 = vadd.f32 %v928, %v862
        %v961 = vadd.f32 %v929, %v865
        %v962 = vadd.f32 %v930, %v870
        %v963 = vadd.f32 %v931, %v873
        %v964 = vadd.f32 %v932, %v878
        %v965 = vadd.f32 %v933, %v881
        %v966 = vadd.f32 %v934, %v886
        %v967 = vadd.f32 %v935, %v889
        %v968 = vadd.f32 %v936, %v894
        %v969 = vadd.f32 %v937, %v897
        %v970 = vadd.f32 %v938, %v902
        %v971 = vadd.f32 %v939, %v905
        %v972 = vld [vmem:[%s4] sm:$0x1]
        %v974 = vlaneseq
        %v975 = vshrl.u32 %v974, 7
        %v976 = vsub.s32 0, %v975
        %v977 = vrot.slane %v972, %v976
        %v979 = vadd.f32 %v940, %v977
        %v980 = vadd.f32 %v941, %v977
        %v981 = vadd.f32 %v942, %v977
        %v982 = vadd.f32 %v943, %v977
        %v983 = vadd.f32 %v944, %v977
        %v984 = vadd.f32 %v945, %v977
        %v985 = vadd.f32 %v946, %v977
        %v986 = vadd.f32 %v947, %v977
        %v987 = vadd.f32 %v948, %v977
        %v988 = vadd.f32 %v949, %v977
        %v989 = vadd.f32 %v950, %v977
        %v990 = vadd.f32 %v951, %v977
        %v991 = vadd.f32 %v952, %v977
        %v992 = vadd.f32 %v953, %v977
        %v993 = vadd.f32 %v954, %v977
        %v994 = vadd.f32 %v955, %v977
        %v995 = vadd.f32 %v956, %v977
        %v996 = vadd.f32 %v957, %v977
        %v997 = vadd.f32 %v958, %v977
        %v998 = vadd.f32 %v959, %v977
        %v999 = vadd.f32 %v960, %v977
        %v1000 = vadd.f32 %v961, %v977
        %v1001 = vadd.f32 %v962, %v977
        %v1002 = vadd.f32 %v963, %v977
        %v1003 = vadd.f32 %v964, %v977
        %v1004 = vadd.f32 %v965, %v977
        %v1005 = vadd.f32 %v966, %v977
        %v1006 = vadd.f32 %v967, %v977
        %v1007 = vadd.f32 %v968, %v977
        %v1008 = vadd.f32 %v969, %v977
        %v1009 = vadd.f32 %v970, %v977
        %v1010 = vadd.f32 %v971, %v977
        %v1011 = vpack.c.bf16 %v980, %v979
        %v1012 = vpack.c.bf16 %v982, %v981
        %v1013 = vpack.c.bf16 %v984, %v983
        %v1014 = vpack.c.bf16 %v986, %v985
        %v1015 = vpack.c.bf16 %v988, %v987
        %v1016 = vpack.c.bf16 %v990, %v989
        %v1017 = vpack.c.bf16 %v992, %v991
        %v1018 = vpack.c.bf16 %v994, %v993
        %v1019 = vpack.c.bf16 %v996, %v995
        %v1020 = vpack.c.bf16 %v998, %v997
        %v1021 = vpack.c.bf16 %v1000, %v999
        %v1022 = vpack.c.bf16 %v1002, %v1001
        %v1023 = vpack.c.bf16 %v1004, %v1003
        %v1024 = vpack.c.bf16 %v1006, %v1005
        %v1025 = vpack.c.bf16 %v1008, %v1007
        %v1026 = vpack.c.bf16 %v1010, %v1009
        %v1043 = vunpack.c.l.b16 %v1011
        %v1044 = vunpack.c.h.b16 %v1011
        %v1045 = vunpack.c.l.b16 %v1012
        %v1046 = vunpack.c.h.b16 %v1012
        %v1047 = vunpack.c.l.b16 %v1013
        %v1048 = vunpack.c.h.b16 %v1013
        %v1049 = vunpack.c.l.b16 %v1014
        %v1050 = vunpack.c.h.b16 %v1014
        %v1051 = vunpack.c.l.b16 %v1015
        %v1052 = vunpack.c.h.b16 %v1015
        %v1053 = vunpack.c.l.b16 %v1016
        %v1054 = vunpack.c.h.b16 %v1016
        %v1055 = vunpack.c.l.b16 %v1017
        %v1056 = vunpack.c.h.b16 %v1017
        %v1057 = vunpack.c.l.b16 %v1018
        %v1058 = vunpack.c.h.b16 %v1018
        %v1059 = vunpack.c.l.b16 %v1019
        %v1060 = vunpack.c.h.b16 %v1019
        %v1061 = vunpack.c.l.b16 %v1020
        %v1062 = vunpack.c.h.b16 %v1020
        %v1063 = vunpack.c.l.b16 %v1021
        %v1064 = vunpack.c.h.b16 %v1021
        %v1065 = vunpack.c.l.b16 %v1022
        %v1066 = vunpack.c.h.b16 %v1022
        %v1067 = vunpack.c.l.b16 %v1023
        %v1068 = vunpack.c.h.b16 %v1023
        %v1069 = vunpack.c.l.b16 %v1024
        %v1070 = vunpack.c.h.b16 %v1024
        %v1071 = vunpack.c.l.b16 %v1025
        %v1072 = vunpack.c.h.b16 %v1025
        %v1073 = vunpack.c.l.b16 %v1026
        %v1074 = vunpack.c.h.b16 %v1026
        %v1075 = vpack.c.b16 %v1043, %v1043
        %v1076 = vpack.c.b16 %v1044, %v1044
        %v1077 = vpack.c.b16 %v1045, %v1045
        %v1078 = vpack.c.b16 %v1046, %v1046
        %v1079 = vpack.c.b16 %v1047, %v1047
        %v1080 = vpack.c.b16 %v1048, %v1048
        %v1081 = vpack.c.b16 %v1049, %v1049
        %v1082 = vpack.c.b16 %v1050, %v1050
        %v1083 = vpack.c.b16 %v1051, %v1051
        %v1084 = vpack.c.b16 %v1052, %v1052
        %v1085 = vpack.c.b16 %v1053, %v1053
        %v1086 = vpack.c.b16 %v1054, %v1054
        %v1087 = vpack.c.b16 %v1055, %v1055
        %v1088 = vpack.c.b16 %v1056, %v1056
        %v1089 = vpack.c.b16 %v1057, %v1057
        %v1090 = vpack.c.b16 %v1058, %v1058
        %v1091 = vpack.c.b16 %v1059, %v1059
        %v1092 = vpack.c.b16 %v1060, %v1060
        %v1093 = vpack.c.b16 %v1061, %v1061
        %v1094 = vpack.c.b16 %v1062, %v1062
        %v1095 = vpack.c.b16 %v1063, %v1063
        %v1096 = vpack.c.b16 %v1064, %v1064
        %v1097 = vpack.c.b16 %v1065, %v1065
        %v1098 = vpack.c.b16 %v1066, %v1066
        %v1099 = vpack.c.b16 %v1067, %v1067
        %v1100 = vpack.c.b16 %v1068, %v1068
        %v1101 = vpack.c.b16 %v1069, %v1069
        %v1102 = vpack.c.b16 %v1070, %v1070
        %v1103 = vpack.c.b16 %v1071, %v1071
        %v1104 = vpack.c.b16 %v1072, %v1072
        %v1105 = vpack.c.b16 %v1073, %v1073
        %v1106 = vpack.c.b16 %v1074, %v1074
        %1139 = vst [vmem:[%s271] sm:$0xf] %v1075
        %1140 = vst [vmem:[%s271 + $0x4] sm:$0xf] %v1076
        %1141 = vst [vmem:[%s271 + $0x8] sm:$0xf] %v1077
        %1142 = vst [vmem:[%s271 + $0xc] sm:$0xf] %v1078
        %1143 = vst [vmem:[%s271 + $0x10] sm:$0xf] %v1079
        %1144 = vst [vmem:[%s271 + $0x14] sm:$0xf] %v1080
        %1145 = vst [vmem:[%s271 + $0x18] sm:$0xf] %v1081
        %1146 = vst [vmem:[%s271 + $0x1c] sm:$0xf] %v1082
        %1147 = vst [vmem:[%s271 + $0x20] sm:$0xf] %v1083
        %1148 = vst [vmem:[%s271 + $0x24] sm:$0xf] %v1084
        %1149 = vst [vmem:[%s271 + $0x28] sm:$0xf] %v1085
        %1150 = vst [vmem:[%s271 + $0x2c] sm:$0xf] %v1086
        %1151 = vst [vmem:[%s271 + $0x30] sm:$0xf] %v1087
        %1152 = vst [vmem:[%s271 + $0x34] sm:$0xf] %v1088
        %1153 = vst [vmem:[%s271 + $0x38] sm:$0xf] %v1089
        %1154 = vst [vmem:[%s271 + $0x3c] sm:$0xf] %v1090
        %1155 = vst [vmem:[%s271 + $0x40] sm:$0xf] %v1091
        %1156 = vst [vmem:[%s271 + $0x44] sm:$0xf] %v1092
        %1157 = vst [vmem:[%s271 + $0x48] sm:$0xf] %v1093
        %1158 = vst [vmem:[%s271 + $0x4c] sm:$0xf] %v1094
        %1159 = vst [vmem:[%s271 + $0x50] sm:$0xf] %v1095
        %1160 = vst [vmem:[%s271 + $0x54] sm:$0xf] %v1096
        %1161 = vst [vmem:[%s271 + $0x58] sm:$0xf] %v1097
        %1162 = vst [vmem:[%s271 + $0x5c] sm:$0xf] %v1098
        %1163 = vst [vmem:[%s271 + $0x60] sm:$0xf] %v1099
        %1164 = vst [vmem:[%s271 + $0x64] sm:$0xf] %v1100
        %1165 = vst [vmem:[%s271 + $0x68] sm:$0xf] %v1101
        %1166 = vst [vmem:[%s271 + $0x6c] sm:$0xf] %v1102
        %1167 = vst [vmem:[%s271 + $0x70] sm:$0xf] %v1103
        %1168 = vst [vmem:[%s271 + $0x74] sm:$0xf] %v1104
        %1169 = vst [vmem:[%s271 + $0x78] sm:$0xf] %v1105
        %1170 = vst [vmem:[%s271 + $0x7c] sm:$0xf] %v1106
        %s1171 = sand.u32 %s141, 1
        %s1172 = scalar_lea.sflag [#allocation4], %s1171
        %s1173 = sand.u32 %s141, 1
        %s1174 = smul.addr %s1173, 128
        %s1175 = scalar_lea.vmem [#allocation8], %s1174
        // Predicated region
        $region53: #{tpu_custom_call.1} parent=39 // pred_check
          %p1176 = pneg %p151
        $region54: #{tpu_custom_call.1} parent=39 // pred_check_branch
          %1178 = sbr.rel (%p1176) target = $region56
        $region55: #{tpu_custom_call.1} parent=39 // pred_region
          %s1179 = smul.u32 32, %s23
          %s1181 = ssub.s32 2048, 2048
          %1182 = vsyncadd %s1172, %s1181
          %s1183 = smul.addr %s1179, 64
          %s1184 = scalar_lea.hbm %s5, %s1183
          %s1185 = sshll.u32 %s1175, 4
          %s1186 = int_to_ptr.vmem [resolvable:$true] %s1185
          %1191 = dma.vmem_to_hbm [thread:$0]  %s1186, 2048, %s1184, %s1172, 64, 64, 4
        $region56: #{tpu_custom_call.1} parent=39 // pred_fallthru
          _
      $region40: #{tpu_custom_call.1} parent=5 // pred_fallthru
        _
      %p1192 = scmp.le.s32.totalorder 2, %s18
      // Predicated region
      $region57: #{tpu_custom_call.1} parent=5 // pred_check
        %p1193 = pneg %p1192
      $region58: #{tpu_custom_call.1} parent=5 // pred_check_branch
        %1195 = sbr.rel (%p1193) target = $region60
      $region59: #{tpu_custom_call.1} parent=5 // pred_region
        %s1196 = ssub.s32 %s18, 2
        // Predicated region
        $region61: #{tpu_custom_call.1} parent=59 // pred_check
          %p1197 = pneg %p157
        $region62: #{tpu_custom_call.1} parent=59 // pred_check_branch
          %1199 = sbr.rel (%p1197) target = $region64
        $region63: #{tpu_custom_call.1} parent=59 // pred_region
          %s1200 = sand.u32 %s142, 1
          %s1201 = scalar_lea.sflag [#allocation4], %s1200
          %s1202 = sand.u32 %s142, 1
          %s1203 = smul.addr %s1202, 128
          %s1204 = scalar_lea.vmem [#allocation8], %s1203
          %1205 = dma.done %s1201, 2048
        $region64: #{tpu_custom_call.1} parent=59 // pred_fallthru
          _
      $region60: #{tpu_custom_call.1} parent=5 // pred_fallthru
        _
    $region6: #{tpu_custom_call.1} parent=1 // loop_footer
      %s22 = sadd.s32 1, %s18
    $region7: #{tpu_custom_call.1} parent=1 // loop_footer_branch
      %17 = sbr.rel target = $region3
    $region8: #{tpu_custom_call.1} parent=1 // loop_exit
      _
    %1206 = vsyncpa [#allocation3], 1
    %s1207 = scalar_lea.sflag [#allocation3], 1
    %1208 = vsyncpa %s1207, 1
    %1209 = vsyncpa [#allocation6], 1
    %1210 = vsyncpa [#allocation4], 1
    %s1211 = scalar_lea.sflag [#allocation4], 1
    %1212 = vsyncpa %s1211, 1

</llo_original>
